<compile_context>
chip_gen: v7x
topology: tpu7x:2x2x1
jax: 0.10.0
libtpu: 0.0.40
codegen_flags: <defaults>
</compile_context>

<pallas_src>
import jax
import jax.numpy as jnp
from jax import lax
from jax.experimental import pallas as pl
from jax.experimental.pallas import tpu as pltpu


def _round_up(x, m):
    return (x + m - 1) // m * m


def _patch_embed_kernel(w_ref, x_ref, b_ref, o_ref):
    # w_ref: [tn, K]     (compute dtype)  -- embed-dim tile of the weight
    # x_ref: [1, K, tp]  (compute dtype)  -- patch tile of one image
    # b_ref: [tn, 1]     f32              -- bias tile
    # o_ref: [1, tn, tp] (output dtype)   -- NCHW-ordered output tile
    acc = jnp.dot(w_ref[...], x_ref[0], preferred_element_type=jnp.float32)
    o_ref[0, :, :] = (acc + b_ref[...]).astype(o_ref.dtype)


def _select_tiles(P, K, E_pad, cb, ob, budget):
    """Pick (tp, tn, P_pad) so the double-buffered tiles fit the VMEM budget."""

    def fits(tp, tn):
        # 2 buffers each for: weight tile, activation tile, output tile, bias.
        return 2 * ((tn * K + K * tp) * cb + tn * tp * ob + tn * 4) <= budget

    tp_exact = [P] + [t for t in (512, 256, 128) if t < P and P % t == 0]
    tn_tiled = [t for t in (512, 256, 128) if t < E_pad and E_pad % t == 0]

    # 1) Preferred: weight fully resident (fetched once), largest exact patch
    #    tile (no P padding, no post-kernel slice copy).
    for tp in tp_exact:
        if fits(tp, E_pad):
            return tp, E_pad, P
    # 2) Tile the embed dim too (weight re-fetched once per patch tile).
    for tp in tp_exact:
        for tn in tn_tiled:
            if fits(tp, tn):
                return tp, tn, P
    # 3) Last resort: pad P to a lane-aligned tile (rare; costs an output slice).
    for tp in (512, 256, 128):
        for tn in [E_pad] + tn_tiled:
            if fits(tp, tn):
                return tp, tn, _round_up(P, tp)
    return 128, 128, _round_up(P, 128)


def patch_embed(x, weight, bias, patch_size, *, compute_dtype=jnp.bfloat16):
    """Equivalent of nn.Conv2d(C, E, kernel_size=p, stride=p)(x) (PatchEmbed.forward).

    x:      [B, C, H, W]          (NCHW, like PyTorch)
    weight: [E, C, ph, pw]        (PyTorch Conv2d weight layout)
    bias:   [E]
    returns [B, E, H//ph, W//pw]  (PyTorch conv output, NCHW)
    """
    ph, pw = patch_size
    B, C, H, W = x.shape
    E = weight.shape[0]
    assert H % ph == 0 and W % pw == 0, "image size must be divisible by patch size"
    Hp, Wp = H // ph, W // pw
    P = Hp * Wp
    K = C * ph * pw
    out_dtype = x.dtype

    # --- glue: patchify straight into the transposed [B, K, P] layout the
    # kernel consumes (single XLA fusion; the only HBM pass over x).
    # TODO(synk): this transpose could be folded into the kernel via a 6-D
    # BlockSpec + in-kernel relayout, but the XLA fusion is already one pass
    # and keeping it outside keeps the lowering robust.
    xt = x.astype(compute_dtype).reshape(B, C, Hp, ph, Wp, pw)
    xt = jnp.transpose(xt, (0, 1, 3, 5, 2, 4))        # [B, C, ph, pw, Hp, Wp]
    xt = xt.reshape(B, K, P)

    # Conv2d with stride == kernel_size is a plain matmul; PyTorch's weight
    # layout reshapes directly into the [E, K] operand (no transpose needed).
    w_mat = weight.reshape(E, K).astype(compute_dtype)
    b_mat = bias.astype(jnp.float32).reshape(E, 1)     # bias added in f32

    # --- pad embed dim (sublane dim of the output tiles) to lane width ---
    E_pad = _round_up(E, 128)
    if E_pad != E:
        w_mat = jnp.pad(w_mat, ((0, E_pad - E), (0, 0)))
        b_mat = jnp.pad(b_mat, ((0, E_pad - E), (0, 0)))

    cb = jnp.dtype(compute_dtype).itemsize
    ob = jnp.dtype(out_dtype).itemsize
    # 12 MiB working-set budget fits every generation's default scoped VMEM
    # (16 MiB on v5e) without needing a vmem_limit_bytes override.
    tp, tn, P_pad = _select_tiles(P, K, E_pad, cb, ob, budget=12 * 1024 * 1024)
    if P_pad != P:
        xt = jnp.pad(xt, ((0, 0), (0, 0), (0, P_pad - P)))

    grid = (B, P_pad // tp, E_pad // tn)
    bytes_accessed = (
        w_mat.size * w_mat.dtype.itemsize
        + xt.size * xt.dtype.itemsize
        + b_mat.size * b_mat.dtype.itemsize
        + B * E_pad * P_pad * ob
    )

    out = pl.pallas_call(
        _patch_embed_kernel,
        out_shape=jax.ShapeDtypeStruct((B, E_pad, P_pad), out_dtype),
        grid=grid,
        in_specs=[
            # Weight tile: depends on j only -> DMA'd exactly once when tn == E_pad.
            pl.BlockSpec((tn, K), lambda b, pi, j: (j, 0)),
            # Activation tile: constant across the inner j loop -> single fetch.
            pl.BlockSpec((1, K, tp), lambda b, pi, j: (b, 0, pi)),
            # Bias tile (f32).
            pl.BlockSpec((tn, 1), lambda b, pi, j: (j, 0)),
        ],
        out_specs=pl.BlockSpec((1, tn, tp), lambda b, pi, j: (b, j, pi)),
        compiler_params=pltpu.CompilerParams(
            dimension_semantics=("parallel", "parallel", "parallel"),
        ),
        cost_estimate=pl.CostEstimate(
            flops=2 * B * P_pad * K * E_pad,
            transcendentals=0,
            bytes_accessed=int(bytes_accessed),
        ),
    )(w_mat, xt, b_mat)

    # --- glue: strip padding (no-op at standard ViT shapes) and restore the
    # 2-D spatial grid; already in PyTorch NCHW order, so no transpose pass.
    if E_pad != E or P_pad != P:
        out = out[:, :E, :P]
    return out.reshape(B, E, Hp, Wp)


if __name__ == "__main__":
    # Small shapes consistent with the module: img_size=16, patch_size=4,
    # in_chans=4, embed_dim=32  ->  x: [2, 4, 16, 16]
    B, C, H, W = 2, 4, 16, 16
    ph = pw = 4
    E = 32

    key = jax.random.PRNGKey(0)
    kx, kw, kb = jax.random.split(key, 3)
    x = jax.random.normal(kx, (B, C, H, W), dtype=jnp.float32)
    weight = jax.random.normal(kw, (E, C, ph, pw), dtype=jnp.float32) * 0.02
    bias = jax.random.normal(kb, (E,), dtype=jnp.float32) * 0.02

    out = patch_embed(x, weight, bias, (ph, pw))
    out = jax.block_until_ready(out)
    assert out.shape == (B, E, H // ph, W // pw)

    # Reference: same math (bf16-rounded inputs, f32 accumulation) via XLA conv,
    # matching nn.Conv2d(stride=kernel_size) semantics.
    x_r = x.astype(jnp.bfloat16).astype(jnp.float32)
    w_r = weight.astype(jnp.bfloat16).astype(jnp.float32)
    ref = lax.conv_general_dilated(
        x_r, w_r, window_strides=(ph, pw), padding="VALID",
        dimension_numbers=("NCHW", "OIHW", "NCHW"),
        precision=lax.Precision.HIGHEST,
    ) + bias.reshape(1, E, 1, 1)
    err = float(jnp.max(jnp.abs(out - ref)))
    assert jnp.allclose(out, ref, atol=1e-3, rtol=1e-3), f"max abs err {err}"

    print("KERNEL_OK")
</pallas_src>

<mosaic_0001>
module attributes {stable_mosaic.version = 11 : i64} {
  func.func @_patch_embed_kernel(%arg0: i32, %arg1: i32, %arg2: i32, %arg3: memref<128x64xbf16, #tpu.memory_space<vmem>>, %arg4: memref<1x64x16xbf16, #tpu.memory_space<vmem>>, %arg5: memref<128x1xf32, #tpu.memory_space<vmem>>, %arg6: memref<1x128x16xf32, #tpu.memory_space<vmem>>) attributes {dimension_semantics = [#tpu.dimension_semantics<parallel>, #tpu.dimension_semantics<parallel>, #tpu.dimension_semantics<parallel>], iteration_bounds = array<i64: 2, 1, 1>, scalar_prefetch = 0 : i64, scratch_operands = 0 : i64, tpu.core_type = #tpu.core_type<tc>, window_params = [{transform_indices = @transform_0, window_bounds = array<i64: 128, 64>}, {transform_indices = @transform_1, window_bounds = array<i64: 1, 64, 16>}, {transform_indices = @transform_2, window_bounds = array<i64: 128, 1>}, {transform_indices = @transform_3, window_bounds = array<i64: 1, 128, 16>}]} {
    %c0 = arith.constant 0 : index
    %c0_0 = arith.constant 0 : index
    %0 = vector.load %arg3[%c0, %c0_0] : memref<128x64xbf16, #tpu.memory_space<vmem>>, vector<128x64xbf16>
    %c0_1 = arith.constant 0 : index
    %c0_2 = arith.constant 0 : index
    %c0_3 = arith.constant 0 : index
    %1 = vector.load %arg4[%c0_1, %c0_2, %c0_3] : memref<1x64x16xbf16, #tpu.memory_space<vmem>>, vector<1x64x16xbf16>
    %2 = vector.shape_cast %1 : vector<1x64x16xbf16> to vector<64x16xbf16>
    %cst = arith.constant dense<0.000000e+00> : vector<128x16xf32>
    %3 = tpu.matmul %0, %2, %cst {dimension_numbers = #tpu.dot_dimension_numbers<[1], [0], [0], [1], [0, 0, 1, 1], [], []>} : vector<128x64xbf16>, vector<64x16xbf16>, vector<128x16xf32> -> vector<128x16xf32>
    %c0_4 = arith.constant 0 : index
    %c0_5 = arith.constant 0 : index
    %4 = vector.load %arg5[%c0_4, %c0_5] : memref<128x1xf32, #tpu.memory_space<vmem>>, vector<128x1xf32>
    %5 = vector.broadcast %4 : vector<128x1xf32> to vector<128x16xf32>
    %6 = arith.addf %3, %5 : vector<128x16xf32>
    %c0_6 = arith.constant 0 : index
    %c0_7 = arith.constant 0 : index
    %c0_8 = arith.constant 0 : index
    %7 = vector.load %arg6[%c0_6, %c0_7, %c0_8] : memref<1x128x16xf32, #tpu.memory_space<vmem>>, vector<1x128x16xf32>
    %8 = vector.shape_cast %7 : vector<1x128x16xf32> to vector<128x16xf32>
    %9 = vector.shape_cast %6 : vector<128x16xf32> to vector<1x128x16xf32>
    tpu.vector_store %arg6[%c0_6, %c0_7, %c0_8], %9 {strides = array<i32>} : memref<1x128x16xf32, #tpu.memory_space<vmem>>, vector<1x128x16xf32>,
    return
  }
  func.func @transform_0(%arg0: i32, %arg1: i32, %arg2: i32) -> (i32, i32) {
    %c0_i32 = arith.constant 0 : i32
    %c0_i32_0 = arith.constant 0 : i32
    return %arg2, %c0_i32 : i32, i32
  }
  func.func @transform_1(%arg0: i32, %arg1: i32, %arg2: i32) -> (i32, i32, i32) {
    %c0_i32 = arith.constant 0 : i32
    %c0_i32_0 = arith.constant 0 : i32
    return %arg0, %c0_i32, %arg1 : i32, i32, i32
  }
  func.func @transform_2(%arg0: i32, %arg1: i32, %arg2: i32) -> (i32, i32) {
    %c0_i32 = arith.constant 0 : i32
    %c0_i32_0 = arith.constant 0 : i32
    return %arg2, %c0_i32 : i32, i32
  }
  func.func @transform_3(%arg0: i32, %arg1: i32, %arg2: i32) -> (i32, i32, i32) {
    %c0_i32 = arith.constant 0 : i32
    return %arg0, %arg2, %arg1 : i32, i32, i32
  }
}

</mosaic_0001>

<llo_original>
// kernel: tpu_custom_call.1
$region0: #{tpu_custom_call.1}
  #allocation0 [shape = 'u32[]', space=smem, size = 0x4, offset = 0x4, fixed_abs, tag = 'smem constant byte address 0x4 - core index']
  #allocation1 [shape = 'u32[144,128]{1,0:T(1,128)}', space=vmem, size = 0x12000, scoped, tag = 'internal scratch']
  %s0 = inlined_call_operand.vmem [shape: bf16[128,64], index: 0, kind: input, shape index: {}]
  %s1 = inlined_call_operand.vmem [shape: bf16[2,64,16], index: 1, kind: input, shape index: {}]
  %s2 = inlined_call_operand.vmem [shape: f32[128,1], index: 2, kind: input, shape index: {}]
  %s3 = inlined_call_operand.vmem [shape: f32[2,128,16], index: 3, kind: output, shape index: {}]
  %s4 = sld [smem:[#allocation0]]
  $region45: #{tpu_custom_call.1} parent=0
    _
  %s6 = ssub.s32 1, %s4
  %s7 = scalar_select 0, %s6, %s4
  loop: start=0, step=1, limit=4
  $region2: #{tpu_custom_call.1} parent=0 // loop_pre_header
    _
  $region3: #{tpu_custom_call.1} parent=0 // loop_header
    %s9 = sphi 0, %s13
    %p10 = scmp.ge.s32.totalorder %s9, 4
    %s16 = sphi 0, %s35
    %s17 = sphi 0, %s31
    %s18 = sphi 0, %s27
    %s19 = sphi 0, %s16
    %s20 = sphi 0, %s17
    %s21 = sphi 0, %s18
    %s22 = sphi 0, %s19
    %s23 = sphi 0, %s20
    %s24 = sphi 0, %s21
    %s38 = sphi 0, %s40
    %s41 = sphi 0, %s38
    %s42 = sphi 0, %s41
    %s58 = sphi 0, %s42
    %s66 = sphi 0, %s68
    %s69 = sphi 0, %s66
    %s70 = sphi 0, %s69
    %s86 = sphi 0, %s70
    %s92 = sphi 0, %s94
    %s95 = sphi 0, %s92
    %s96 = sphi 0, %s95
    %s112 = sphi 0, %s96
    %s122 = sphi 0, %s124
    %s125 = sphi 0, %s122
    %s126 = sphi 0, %s125
    %s142 = sphi 0, %s126
  $region4: #{tpu_custom_call.1} parent=0 // loop_header_branch
    %12 = sbr.rel (%p10) target = $region8
  $region5: #{tpu_custom_call.1} parent=0 // loop_body
    %s14 = ssub.s32 %s9, 1
    %s15 = ssub.s32 %s9, 2
    %s25 = sadd.s32 1, %s18
    %p26 = scmp.ge.s32.totalorder %s25, 1
    %s27 = scalar_select %p26, 0, %s25
    %s28 = sadd.s32 1, %s17
    %s29 = scalar_select %p26, %s28, %s17
    %p30 = scmp.ge.s32.totalorder %s29, 1
    %s31 = scalar_select %p30, 0, %s29
    %s32 = sadd.s32 1, %s16
    %s33 = scalar_select %p30, %s32, %s16
    %p34 = scmp.ge.s32.totalorder %s33, 2
    %s35 = scalar_select %p34, 0, %s33
    %s36 = ssub.s32 %s18, %s27
    %p37 = scmp.eq.s32.totalorder %s36, 0
    %s39 = sadd.s32 %s38, 1
    %s40 = scalar_select %p37, %s38, %s39
    %p43 = pneg %p37
    %p44 = scmp.eq.s32.totalorder %s9, 1
    %p45 = por %p43, %p44
    %p46 = scmp.ne.s32.totalorder %s38, %s41
    %p47 = scmp.eq.s32.totalorder %s9, 0
    %p48 = por %p46, %p47
    %p49 = scmp.ne.s32.totalorder %s38, %s41
    %p50 = scmp.eq.s32.totalorder %s14, 1
    %p51 = por %p49, %p50
    %p52 = scmp.ne.s32.totalorder %s41, %s42
    %p53 = scmp.eq.s32.totalorder %s14, 0
    %p54 = por %p52, %p53
    %p55 = scmp.ne.s32.totalorder %s41, %s42
    %p56 = scmp.eq.s32.totalorder %s15, 1
    %p57 = por %p55, %p56
    %p59 = scmp.ne.s32.totalorder %s42, %s58
    %p60 = scmp.eq.s32.totalorder %s15, 0
    %p61 = por %p59, %p60
    %s62 = ssub.s32 %s16, %s35
    %s63 = ssub.s32 %s17, %s31
    %s64 = sor.u32 %s62, %s63
    %p65 = scmp.eq.s32.totalorder %s64, 0
    %s67 = sadd.s32 %s66, 1
    %s68 = scalar_select %p65, %s66, %s67
    %p71 = pneg %p65
    %p72 = scmp.eq.s32.totalorder %s9, 1
    %p73 = por %p71, %p72
    %p74 = scmp.ne.s32.totalorder %s66, %s69
    %p75 = scmp.eq.s32.totalorder %s9, 0
    %p76 = por %p74, %p75
    %p77 = scmp.ne.s32.totalorder %s66, %s69
    %p78 = scmp.eq.s32.totalorder %s14, 1
    %p79 = por %p77, %p78
    %p80 = scmp.ne.s32.totalorder %s69, %s70
    %p81 = scmp.eq.s32.totalorder %s14, 0
    %p82 = por %p80, %p81
    %p83 = scmp.ne.s32.totalorder %s69, %s70
    %p84 = scmp.eq.s32.totalorder %s15, 1
    %p85 = por %p83, %p84
    %p87 = scmp.ne.s32.totalorder %s70, %s86
    %p88 = scmp.eq.s32.totalorder %s15, 0
    %p89 = por %p87, %p88
    %s90 = ssub.s32 %s18, %s27
    %p91 = scmp.eq.s32.totalorder %s90, 0
    %s93 = sadd.s32 %s92, 1
    %s94 = scalar_select %p91, %s92, %s93
    %p97 = pneg %p91
    %p98 = scmp.eq.s32.totalorder %s9, 1
    %p99 = por %p97, %p98
    %p100 = scmp.ne.s32.totalorder %s92, %s95
    %p101 = scmp.eq.s32.totalorder %s9, 0
    %p102 = por %p100, %p101
    %p103 = scmp.ne.s32.totalorder %s92, %s95
    %p104 = scmp.eq.s32.totalorder %s14, 1
    %p105 = por %p103, %p104
    %p106 = scmp.ne.s32.totalorder %s95, %s96
    %p107 = scmp.eq.s32.totalorder %s14, 0
    %p108 = por %p106, %p107
    %p109 = scmp.ne.s32.totalorder %s95, %s96
    %p110 = scmp.eq.s32.totalorder %s15, 1
    %p111 = por %p109, %p110
    %p113 = scmp.ne.s32.totalorder %s96, %s112
    %p114 = scmp.eq.s32.totalorder %s15, 0
    %p115 = por %p113, %p114
    %s116 = ssub.s32 %s16, %s35
    %s117 = ssub.s32 %s18, %s27
    %s118 = sor.u32 %s116, %s117
    %s119 = ssub.s32 %s17, %s31
    %s120 = sor.u32 %s118, %s119
    %p121 = scmp.eq.s32.totalorder %s120, 0
    %s123 = sadd.s32 %s122, 1
    %s124 = scalar_select %p121, %s122, %s123
    %p127 = pneg %p121
    %p128 = scmp.eq.s32.totalorder %s9, 1
    %p129 = por %p127, %p128
    %p130 = scmp.ne.s32.totalorder %s122, %s125
    %p131 = scmp.eq.s32.totalorder %s9, 0
    %p132 = por %p130, %p131
    %p133 = scmp.ne.s32.totalorder %s122, %s125
    %p134 = scmp.eq.s32.totalorder %s14, 1
    %p135 = por %p133, %p134
    %p136 = scmp.ne.s32.totalorder %s125, %s126
    %p137 = scmp.eq.s32.totalorder %s14, 0
    %p138 = por %p136, %p137
    %p139 = scmp.ne.s32.totalorder %s125, %s126
    %p140 = scmp.eq.s32.totalorder %s15, 1
    %p141 = por %p139, %p140
    %p143 = scmp.ne.s32.totalorder %s126, %s142
    %p144 = scmp.eq.s32.totalorder %s15, 0
    %p145 = por %p143, %p144
    %p146 = scmp.le.s32.totalorder 1, %s9
    %p147 = scmp.lt.s32.totalorder %s9, 3
    %p148 = pnand %p146, %p147
    %p149 = pneg %p148
    // Predicated region
    $region9: #{tpu_custom_call.1} parent=5 // pred_check
      _
    $region10: #{tpu_custom_call.1} parent=5 // pred_check_branch
      %151 = sbr.rel (%p148) target = $region12
    $region11: #{tpu_custom_call.1} parent=5 // pred_region
      %s152 = ssub.s32 %s9, 1
      // Predicated region
      $region13: #{tpu_custom_call.1} parent=11 // pred_check
        %p153 = pneg %p54
      $region14: #{tpu_custom_call.1} parent=11 // pred_check_branch
        %155 = sbr.rel (%p153) target = $region16
      $region15: #{tpu_custom_call.1} parent=11 // pred_region
        %s156 = smul.u32 16, %s21
        %p157 = scmp.lt.s32.totalorder %s156, 15
        %s158 = scalar_select %p157, %s156, 15
        %s159 = smul.addr %s158, 4
        %s160 = scalar_lea.vmem %s0, %s159
        %s161 = smul.u32 16, %s21
      $region16: #{tpu_custom_call.1} parent=11 // pred_fallthru
        _
      // Predicated region
      $region17: #{tpu_custom_call.1} parent=11 // pred_check
        %p162 = pneg %p108
      $region18: #{tpu_custom_call.1} parent=11 // pred_check_branch
        %164 = sbr.rel (%p162) target = $region20
      $region19: #{tpu_custom_call.1} parent=11 // pred_region
        %s165 = smul.u32 16, %s21
        %p166 = scmp.lt.s32.totalorder %s165, 15
        %s167 = scalar_select %p166, %s165, 15
        %s168 = smul.addr %s167, 8
        %s169 = scalar_lea.vmem %s2, %s168
        %s170 = smul.u32 16, %s21
      $region20: #{tpu_custom_call.1} parent=11 // pred_fallthru
        _
    $region12: #{tpu_custom_call.1} parent=5 // pred_fallthru
      _
    %p171 = scmp.lt.s32.totalorder %s9, 2
    // Predicated region
    $region21: #{tpu_custom_call.1} parent=5 // pred_check
      %p172 = pneg %p171
    $region22: #{tpu_custom_call.1} parent=5 // pred_check_branch
      %174 = sbr.rel (%p172) target = $region24
    $region23: #{tpu_custom_call.1} parent=5 // pred_region
      // Predicated region
      $region25: #{tpu_custom_call.1} parent=23 // pred_check
        %p175 = pneg %p76
      $region26: #{tpu_custom_call.1} parent=23 // pred_check_branch
        %177 = sbr.rel (%p175) target = $region28
      $region27: #{tpu_custom_call.1} parent=23 // pred_region
        %p178 = scmp.lt.s32.totalorder %s16, 1
        %s179 = scalar_select %p178, %s16, 1
        %p180 = scmp.lt.s32.totalorder %s17, 0
        %s181 = scalar_select %p180, %s17, 0
        %s182 = smul.addr %s179, 8
        %s183 = sadd.s32 %s181, %s182
        %s184 = smul.addr %s183, 4
        %s185 = scalar_lea.vmem %s1, %s184
      $region28: #{tpu_custom_call.1} parent=23 // pred_fallthru
        _
    $region24: #{tpu_custom_call.1} parent=5 // pred_fallthru
      _
    %p186 = scmp.le.s32.totalorder 1, %s9
    %p187 = scmp.lt.s32.totalorder %s9, 3
    %p188 = pnand %p186, %p187
    %p189 = pneg %p188
    // Predicated region
    $region29: #{tpu_custom_call.1} parent=5 // pred_check
      _
    $region30: #{tpu_custom_call.1} parent=5 // pred_check_branch
      %191 = sbr.rel (%p188) target = $region32
    $region31: #{tpu_custom_call.1} parent=5 // pred_region
      %s192 = ssub.s32 %s9, 1
      %s193 = smul.u32 16, %s21
      %p194 = scmp.lt.s32.totalorder %s193, 15
      %s195 = scalar_select %p194, %s193, 15
      %s196 = smul.addr %s195, 4
      %s197 = scalar_lea.vmem %s0, %s196
      %p198 = pneg %p54
      %p199 = pneg %p51
      %p200 = scmp.lt.s32.totalorder %s19, 1
      %s201 = scalar_select %p200, %s19, 1
      %p202 = scmp.lt.s32.totalorder %s20, 0
      %s203 = scalar_select %p202, %s20, 0
      %s204 = smul.addr %s201, 8
      %s205 = sadd.s32 %s203, %s204
      %s206 = smul.addr %s205, 4
      %s207 = scalar_lea.vmem %s1, %s206
      %p208 = pneg %p82
      %p209 = pneg %p79
      %s210 = smul.u32 16, %s21
      %p211 = scmp.lt.s32.totalorder %s210, 15
      %s212 = scalar_select %p211, %s210, 15
      %s213 = smul.addr %s212, 8
      %s214 = scalar_lea.vmem %s2, %s213
      %p215 = pneg %p108
      %p216 = pneg %p105
      %p217 = pneg %p138
      %p218 = pneg %p135
      %s219 = smul.u32 16, %s21
      %p220 = scmp.lt.s32.totalorder %s19, 1
      %s221 = scalar_select %p220, %s19, 1
      %p222 = scmp.lt.s32.totalorder %s219, 15
      %s223 = scalar_select %p222, %s219, 15
      %p224 = scmp.lt.s32.totalorder %s20, 0
      %s225 = scalar_select %p224, %s20, 0
      %s226 = sadd.s32 %s225, %s223
      %s227 = smul.addr %s221, 16
      %s228 = sadd.s32 %s226, %s227
      %s229 = smul.addr %s228, 8
      %s230 = scalar_lea.vmem %s3, %s229
      %s231 = smul.u32 16, %s21
      %p232 = scmp.lt.s32.totalorder %s231, 15
      %s233 = scalar_select %p232, %s231, 15
      %s234 = smul.addr %s233, 4
      %s235 = scalar_lea.vmem %s0, %s234
      %s236 = smul.u32 16, %s21
      %p237 = scmp.lt.s32.totalorder %s19, 1
      %s238 = scalar_select %p237, %s19, 1
      %p239 = scmp.lt.s32.totalorder %s20, 0
      %s240 = scalar_select %p239, %s20, 0
      %s241 = smul.addr %s238, 8
      %s242 = sadd.s32 %s240, %s241
      %s243 = smul.addr %s242, 4
      %s244 = scalar_lea.vmem %s1, %s243
      %s245 = smul.u32 16, %s21
      %p246 = scmp.lt.s32.totalorder %s245, 15
      %s247 = scalar_select %p246, %s245, 15
      %s248 = smul.addr %s247, 8
      %s249 = scalar_lea.vmem %s2, %s248
      %s250 = smul.u32 16, %s21
      %s251 = smul.u32 16, %s21
      %p252 = scmp.lt.s32.totalorder %s19, 1
      %s253 = scalar_select %p252, %s19, 1
      %p254 = scmp.lt.s32.totalorder %s251, 15
      %s255 = scalar_select %p254, %s251, 15
      %p256 = scmp.lt.s32.totalorder %s20, 0
      %s257 = scalar_select %p256, %s20, 0
      %s258 = sadd.s32 %s257, %s255
      %s259 = smul.addr %s253, 16
      %s260 = sadd.s32 %s258, %s259
      %s261 = smul.addr %s260, 8
      %s262 = scalar_lea.vmem %s3, %s261
      %s263 = smul.u32 16, %s21
      %v265 = vld [vmem:[%s235] sm:$0xf]
      %v266 = vld [vmem:[%s235 + $0x4] sm:$0xf]
      %v267 = vld [vmem:[%s235 + $0x8] sm:$0xf]
      %v268 = vld [vmem:[%s235 + $0xc] sm:$0xf]
      %v269 = vld [vmem:[%s235 + $0x10] sm:$0xf]
      %v270 = vld [vmem:[%s235 + $0x14] sm:$0xf]
      %v271 = vld [vmem:[%s235 + $0x18] sm:$0xf]
      %v272 = vld [vmem:[%s235 + $0x1c] sm:$0xf]
      %v273 = vld [vmem:[%s235 + $0x20] sm:$0xf]
      %v274 = vld [vmem:[%s235 + $0x24] sm:$0xf]
      %v275 = vld [vmem:[%s235 + $0x28] sm:$0xf]
      %v276 = vld [vmem:[%s235 + $0x2c] sm:$0xf]
      %v277 = vld [vmem:[%s235 + $0x30] sm:$0xf]
      %v278 = vld [vmem:[%s235 + $0x34] sm:$0xf]
      %v279 = vld [vmem:[%s235 + $0x38] sm:$0xf]
      %v280 = vld [vmem:[%s235 + $0x3c] sm:$0xf]
      %v281 = vld [vmem:[%s244] sm:$0xf]
      %v282 = vld [vmem:[%s244 + $0x4] sm:$0xf]
      %v283 = vld [vmem:[%s244 + $0x8] sm:$0xf]
      %v284 = vld [vmem:[%s244 + $0xc] sm:$0xf]
      %v285 = vld [vmem:[%s244 + $0x10] sm:$0xf]
      %v286 = vld [vmem:[%s244 + $0x14] sm:$0xf]
      %v287 = vld [vmem:[%s244 + $0x18] sm:$0xf]
      %v288 = vld [vmem:[%s244 + $0x1c] sm:$0xf]
      %v289 = vld [vmem:[%s249] sm:$0xff]
      %v290 = vld [vmem:[%s249 + $0x8] sm:$0xff]
      %v291 = vld [vmem:[%s249 + $0x10] sm:$0xff]
      %v292 = vld [vmem:[%s249 + $0x18] sm:$0xff]
      %v293 = vld [vmem:[%s249 + $0x20] sm:$0xff]
      %v294 = vld [vmem:[%s249 + $0x28] sm:$0xff]
      %v295 = vld [vmem:[%s249 + $0x30] sm:$0xff]
      %v296 = vld [vmem:[%s249 + $0x38] sm:$0xff]
      %v297 = vld [vmem:[%s249 + $0x40] sm:$0xff]
      %v298 = vld [vmem:[%s249 + $0x48] sm:$0xff]
      %v299 = vld [vmem:[%s249 + $0x50] sm:$0xff]
      %v300 = vld [vmem:[%s249 + $0x58] sm:$0xff]
      %v301 = vld [vmem:[%s249 + $0x60] sm:$0xff]
      %v302 = vld [vmem:[%s249 + $0x68] sm:$0xff]
      %v303 = vld [vmem:[%s249 + $0x70] sm:$0xff]
      %v304 = vld [vmem:[%s249 + $0x78] sm:$0xff]
      %306 = vset.pattern.permute.xlu0 0
      %307 = vperm.xlu0 %306, %v289
      %v308 = vpop.permute.xlu0 %307
      %311 = vset.pattern.permute.xlu0 0
      %312 = vperm.xlu0 %311, %v290
      %v313 = vpop.permute.xlu0 %312
      %316 = vset.pattern.permute.xlu0 0
      %317 = vperm.xlu0 %316, %v291
      %v318 = vpop.permute.xlu0 %317
      %321 = vset.pattern.permute.xlu0 0
      %322 = vperm.xlu0 %321, %v292
      %v323 = vpop.permute.xlu0 %322
      %326 = vset.pattern.permute.xlu0 0
      %327 = vperm.xlu0 %326, %v293
      %v328 = vpop.permute.xlu0 %327
      %331 = vset.pattern.permute.xlu0 0
      %332 = vperm.xlu0 %331, %v294
      %v333 = vpop.permute.xlu0 %332
      %336 = vset.pattern.permute.xlu0 0
      %337 = vperm.xlu0 %336, %v295
      %v338 = vpop.permute.xlu0 %337
      %341 = vset.pattern.permute.xlu0 0
      %342 = vperm.xlu0 %341, %v296
      %v343 = vpop.permute.xlu0 %342
      %346 = vset.pattern.permute.xlu0 0
      %347 = vperm.xlu0 %346, %v297
      %v348 = vpop.permute.xlu0 %347
      %351 = vset.pattern.permute.xlu0 0
      %352 = vperm.xlu0 %351, %v298
      %v353 = vpop.permute.xlu0 %352
      %356 = vset.pattern.permute.xlu0 0
      %357 = vperm.xlu0 %356, %v299
      %v358 = vpop.permute.xlu0 %357
      %361 = vset.pattern.permute.xlu0 0
      %362 = vperm.xlu0 %361, %v300
      %v363 = vpop.permute.xlu0 %362
      %366 = vset.pattern.permute.xlu0 0
      %367 = vperm.xlu0 %366, %v301
      %v368 = vpop.permute.xlu0 %367
      %371 = vset.pattern.permute.xlu0 0
      %372 = vperm.xlu0 %371, %v302
      %v373 = vpop.permute.xlu0 %372
      %376 = vset.pattern.permute.xlu0 0
      %377 = vperm.xlu0 %376, %v303
      %v378 = vpop.permute.xlu0 %377
      %381 = vset.pattern.permute.xlu0 0
      %382 = vperm.xlu0 %381, %v304
      %v383 = vpop.permute.xlu0 %382
      %v401 = vunpack.c.l.b16 %v265
      %v402 = vunpack.c.l.b16 %v266
      %v403 = vunpack.c.l.b16 %v267
      %v404 = vunpack.c.l.b16 %v268
      %v405 = vunpack.c.l.b16 %v269
      %v406 = vunpack.c.l.b16 %v270
      %v407 = vunpack.c.l.b16 %v271
      %v408 = vunpack.c.l.b16 %v272
      %v409 = vunpack.c.l.b16 %v273
      %v410 = vunpack.c.l.b16 %v274
      %v411 = vunpack.c.l.b16 %v275
      %v412 = vunpack.c.l.b16 %v276
      %v413 = vunpack.c.l.b16 %v277
      %v414 = vunpack.c.l.b16 %v278
      %v415 = vunpack.c.l.b16 %v279
      %v416 = vunpack.c.l.b16 %v280
      %v417 = vpack.c.b16 %v402, %v401
      %v418 = vpack.c.b16 %v404, %v403
      %v419 = vpack.c.b16 %v406, %v405
      %v420 = vpack.c.b16 %v408, %v407
      %v421 = vpack.c.b16 %v410, %v409
      %v422 = vpack.c.b16 %v412, %v411
      %v423 = vpack.c.b16 %v414, %v413
      %v424 = vpack.c.b16 %v416, %v415
      %v433 = vunpack.c.l.b16 %v281
      %v434 = vunpack.c.l.b16 %v282
      %v435 = vunpack.c.l.b16 %v283
      %v436 = vunpack.c.l.b16 %v284
      %v437 = vunpack.c.l.b16 %v285
      %v438 = vunpack.c.l.b16 %v286
      %v439 = vunpack.c.l.b16 %v287
      %v440 = vunpack.c.l.b16 %v288
      %v441 = vpack.c.b16 %v434, %v433
      %v442 = vpack.c.b16 %v436, %v435
      %v443 = vpack.c.b16 %v438, %v437
      %v444 = vpack.c.b16 %v440, %v439
      %vm449 = vcmask 523264
      %v451 = vsel %vm449, %v417, 0
      %v454 = vsel %vm449, %v418, 0
      %v457 = vsel %vm449, %v419, 0
      %v460 = vsel %vm449, %v420, 0
      %v463 = vsel %vm449, %v421, 0
      %v466 = vsel %vm449, %v422, 0
      %v469 = vsel %vm449, %v423, 0
      %v472 = vsel %vm449, %v424, 0
      %474 = vmatprep.subr.bf16.mxu0 0
      %475 = vmatpush1.bf16.msra.mxu0 %v441
      %476 = vmatprep.subr.bf16.mxu0 0
      %477 = vmatpush1.bf16.msra.mxu0 %v442
      %478 = vmatprep.subr.bf16.mxu0 0
      %479 = vmatpush1.bf16.msra.mxu0 %v443
      %480 = vmatprep.subr.bf16.mxu0 0
      %481 = vmatpush1.bf16.msra.mxu0 %v444
      %482 = vmatprep.subr.bf16.mxu0 0
      %483 = vmatpush1.bf16.msra.mxu0 0
      %484 = vmatprep.subr.bf16.mxu0 0
      %485 = vmatpush1.bf16.msra.mxu0 0
      %486 = vmatprep.subr.bf16.mxu0 0
      %487 = vmatpush1.bf16.msra.mxu0 0
      %488 = vmatprep.subr.bf16.mxu0 0
      %489 = vmatpush1.bf16.msra.mxu0 0
      %490 = vmatprep.subr.bf16.mxu0 0
      %491 = vmatpush1.bf16.msra.mxu0 0
      %492 = vmatprep.subr.bf16.mxu0 0
      %493 = vmatpush1.bf16.msra.mxu0 0
      %494 = vmatprep.subr.bf16.mxu0 0
      %495 = vmatpush1.bf16.msra.mxu0 0
      %496 = vmatprep.subr.bf16.mxu0 0
      %497 = vmatpush1.bf16.msra.mxu0 0
      %498 = vmatprep.subr.bf16.mxu0 0
      %499 = vmatpush1.bf16.msra.mxu0 0
      %500 = vmatprep.subr.bf16.mxu0 0
      %501 = vmatpush1.bf16.msra.mxu0 0
      %502 = vmatprep.subr.bf16.mxu0 0
      %503 = vmatpush1.bf16.msra.mxu0 0
      %504 = vmatprep.subr.bf16.mxu0 0
      %505 = vmatpush1.bf16.msra.mxu0 0
      %506 = vmatprep.mubr.bf16.mxu0 0
      %507 = vmatmul.mubr.bf16.gmra.mrb[0].mxu0 %v451
      %v508 = vpop.f32.mrb[0].mxu0
      %v509 = vadd.f32 %v308, %v508
      %v510 = vpop.f32.mrb[0].mxu0
      %v511 = vpop.f32.mrb[0].mxu0
      %v512 = vadd.f32 %v313, %v511
      %v513 = vpop.f32.mrb[0].mxu0
      %514 = vmatprep.mubr.bf16.mxu0 0
      %515 = vmatmul.mubr.bf16.gmra.mrb[0].mxu0 %v454
      %v516 = vpop.f32.mrb[0].mxu0
      %v517 = vadd.f32 %v318, %v516
      %v518 = vpop.f32.mrb[0].mxu0
      %v519 = vpop.f32.mrb[0].mxu0
      %v520 = vadd.f32 %v323, %v519
      %v521 = vpop.f32.mrb[0].mxu0
      %522 = vmatprep.mubr.bf16.mxu0 0
      %523 = vmatmul.mubr.bf16.gmra.mrb[0].mxu0 %v457
      %v524 = vpop.f32.mrb[0].mxu0
      %v525 = vadd.f32 %v328, %v524
      %v526 = vpop.f32.mrb[0].mxu0
      %v527 = vpop.f32.mrb[0].mxu0
      %v528 = vadd.f32 %v333, %v527
      %v529 = vpop.f32.mrb[0].mxu0
      %530 = vmatprep.mubr.bf16.mxu0 0
      %531 = vmatmul.mubr.bf16.gmra.mrb[0].mxu0 %v460
      %v532 = vpop.f32.mrb[0].mxu0
      %v533 = vadd.f32 %v338, %v532
      %v534 = vpop.f32.mrb[0].mxu0
      %v535 = vpop.f32.mrb[0].mxu0
      %v536 = vadd.f32 %v343, %v535
      %v537 = vpop.f32.mrb[0].mxu0
      %538 = vmatprep.mubr.bf16.mxu0 0
      %539 = vmatmul.mubr.bf16.gmra.mrb[0].mxu0 %v463
      %v540 = vpop.f32.mrb[0].mxu0
      %v541 = vadd.f32 %v348, %v540
      %v542 = vpop.f32.mrb[0].mxu0
      %v543 = vpop.f32.mrb[0].mxu0
      %v544 = vadd.f32 %v353, %v543
      %v545 = vpop.f32.mrb[0].mxu0
      %546 = vmatprep.mubr.bf16.mxu0 0
      %547 = vmatmul.mubr.bf16.gmra.mrb[0].mxu0 %v466
      %v548 = vpop.f32.mrb[0].mxu0
      %v549 = vadd.f32 %v358, %v548
      %v550 = vpop.f32.mrb[0].mxu0
      %v551 = vpop.f32.mrb[0].mxu0
      %v552 = vadd.f32 %v363, %v551
      %v553 = vpop.f32.mrb[0].mxu0
      %554 = vmatprep.mubr.bf16.mxu0 0
      %555 = vmatmul.mubr.bf16.gmra.mrb[0].mxu0 %v469
      %v556 = vpop.f32.mrb[0].mxu0
      %v557 = vadd.f32 %v368, %v556
      %v558 = vpop.f32.mrb[0].mxu0
      %v559 = vpop.f32.mrb[0].mxu0
      %v560 = vadd.f32 %v373, %v559
      %v561 = vpop.f32.mrb[0].mxu0
      %562 = vmatprep.mubr.bf16.mxu0 0
      %563 = vmatmul.mubr.bf16.gmra.mrb[0].mxu0 %v472
      %v564 = vpop.f32.mrb[0].mxu0
      %v565 = vadd.f32 %v378, %v564
      %v566 = vpop.f32.mrb[0].mxu0
      %v567 = vpop.f32.mrb[0].mxu0
      %v568 = vadd.f32 %v383, %v567
      %v569 = vpop.f32.mrb[0].mxu0
      %570 = vdwg.mxu0
      %vm571 = vcmask 130048
      %572 = vst.msk [vmem:[%s262] sm:$0xff] %vm571, %v509
      %573 = vst.msk [vmem:[%s262 + $0x8] sm:$0xff] %vm571, %v512
      %574 = vst.msk [vmem:[%s262 + $0x10] sm:$0xff] %vm571, %v517
      %575 = vst.msk [vmem:[%s262 + $0x18] sm:$0xff] %vm571, %v520
      %576 = vst.msk [vmem:[%s262 + $0x20] sm:$0xff] %vm571, %v525
      %577 = vst.msk [vmem:[%s262 + $0x28] sm:$0xff] %vm571, %v528
      %578 = vst.msk [vmem:[%s262 + $0x30] sm:$0xff] %vm571, %v533
      %579 = vst.msk [vmem:[%s262 + $0x38] sm:$0xff] %vm571, %v536
      %580 = vst.msk [vmem:[%s262 + $0x40] sm:$0xff] %vm571, %v541
      %581 = vst.msk [vmem:[%s262 + $0x48] sm:$0xff] %vm571, %v544
      %582 = vst.msk [vmem:[%s262 + $0x50] sm:$0xff] %vm571, %v549
      %583 = vst.msk [vmem:[%s262 + $0x58] sm:$0xff] %vm571, %v552
      %584 = vst.msk [vmem:[%s262 + $0x60] sm:$0xff] %vm571, %v557
      %585 = vst.msk [vmem:[%s262 + $0x68] sm:$0xff] %vm571, %v560
      %586 = vst.msk [vmem:[%s262 + $0x70] sm:$0xff] %vm571, %v565
      %587 = vst.msk [vmem:[%s262 + $0x78] sm:$0xff] %vm571, %v568
      %s588 = smul.u32 16, %s21
      %p589 = scmp.lt.s32.totalorder %s19, 1
      %s590 = scalar_select %p589, %s19, 1
      %p591 = scmp.lt.s32.totalorder %s588, 15
      %s592 = scalar_select %p591, %s588, 15
      %p593 = scmp.lt.s32.totalorder %s20, 0
      %s594 = scalar_select %p593, %s20, 0
      %s595 = sadd.s32 %s594, %s592
      %s596 = smul.addr %s590, 16
      %s597 = sadd.s32 %s595, %s596
      %s598 = smul.addr %s597, 8
      %s599 = scalar_lea.vmem %s3, %s598
      // Predicated region
      $region33: #{tpu_custom_call.1} parent=31 // pred_check
        %p600 = pneg %p135
      $region34: #{tpu_custom_call.1} parent=31 // pred_check_branch
        %602 = sbr.rel (%p600) target = $region36
      $region35: #{tpu_custom_call.1} parent=31 // pred_region
        %s603 = smul.u32 16, %s21
      $region36: #{tpu_custom_call.1} parent=31 // pred_fallthru
        _
    $region32: #{tpu_custom_call.1} parent=5 // pred_fallthru
      _
    %p604 = scmp.le.s32.totalorder 2, %s9
    // Predicated region
    $region37: #{tpu_custom_call.1} parent=5 // pred_check
      %p605 = pneg %p604
    $region38: #{tpu_custom_call.1} parent=5 // pred_check_branch
      %607 = sbr.rel (%p605) target = $region40
    $region39: #{tpu_custom_call.1} parent=5 // pred_region
      %s608 = ssub.s32 %s9, 2
      // Predicated region
      $region41: #{tpu_custom_call.1} parent=39 // pred_check
        %p609 = pneg %p141
      $region42: #{tpu_custom_call.1} parent=39 // pred_check_branch
        %611 = sbr.rel (%p609) target = $region44
      $region43: #{tpu_custom_call.1} parent=39 // pred_region
        %s612 = smul.u32 16, %s24
        %p613 = scmp.lt.s32.totalorder %s22, 1
        %s614 = scalar_select %p613, %s22, 1
        %p615 = scmp.lt.s32.totalorder %s612, 15
        %s616 = scalar_select %p615, %s612, 15
        %p617 = scmp.lt.s32.totalorder %s23, 0
        %s618 = scalar_select %p617, %s23, 0
        %s619 = sadd.s32 %s618, %s616
        %s620 = smul.addr %s614, 16
        %s621 = sadd.s32 %s619, %s620
        %s622 = smul.addr %s621, 8
        %s623 = scalar_lea.vmem %s3, %s622
      $region44: #{tpu_custom_call.1} parent=39 // pred_fallthru
        _
    $region40: #{tpu_custom_call.1} parent=5 // pred_fallthru
      _
  $region6: #{tpu_custom_call.1} parent=0 // loop_footer
    %s13 = sadd.s32 1, %s9
  $region7: #{tpu_custom_call.1} parent=0 // loop_footer_branch
    %8 = sbr.rel target = $region3
  $region8: #{tpu_custom_call.1} parent=0 // loop_exit
    _

</llo_original>
